<compile_context>
chip_gen: v5e
topology: v5e:2x2
jax: 0.10.0
libtpu: 0.0.40
codegen_flags: <defaults>
</compile_context>

<pallas_src>
import jax
import jax.numpy as jnp
from jax.experimental import pallas as pl
from jax.experimental.pallas import tpu as pltpu


def _identity_copy_kernel(x_ref, o_ref):
    # out = x * sum(softmax(stats)) = x * 1.0  (see header)
    o_ref[...] = x_ref[...]


def _round_up(v, m):
    return ((v + m - 1) // m) * m


def _choose_2d_view(shape, max_lane):
    """Pick a lane-dense 2-D view (R, L) of the tensor.

    If numel % 128 == 0, flatten completely and fold as many elements as
    possible into the lane axis (largest 128-multiple divisor <= max_lane),
    so every block store is unmasked.  Otherwise fall back to (N*C, H*W);
    only ragged tail blocks get masked stores.
    """
    N, C, H, W = shape
    total = N * C * H * W
    if total % 128 == 0:
        lane = 128
        for k in range(max_lane // 128, 0, -1):
            if total % (128 * k) == 0:
                lane = 128 * k
                break
        return total // lane, lane
    return N * C, H * W


_BLOCK_BYTES = 4 * 1024 * 1024        # per-block byte budget (see header)
_MAX_LANE = 16 * 1024                 # prefer growing lanes over sublanes
_VMEM_LIMIT = 32 * 1024 * 1024        # explicit: > v5e's 16 MiB default scope
_SUBLANE = {4: 8, 2: 16, 1: 32}       # dtype-native sublane packing tile


def statistical_attention(x, *, block_bytes=_BLOCK_BYTES, max_lane=_MAX_LANE):
    """x: (N, C, H, W) float array.  Returns the module output (== x)."""
    N, C, H, W = x.shape
    itemsize = jnp.dtype(x.dtype).itemsize
    sub = _SUBLANE.get(itemsize, 8)

    R, L = _choose_2d_view(x.shape, max_lane)
    x2 = x.reshape(R, L)

    # Lane (last-dim) tile: full extent when it fits, else a 128-multiple.
    bc = L if L <= max_lane else (max_lane // 128) * 128

    # Sublane tile from the byte budget, rounded to the native packing tile.
    rows_budget = max(sub, (block_bytes // (bc * itemsize)) // sub * sub)
    br = R if R <= rows_budget else rows_budget

    # v7x has 2 TensorCores: give any non-trivial tensor >= 2 blocks on a
    # parallel axis so the mem-bound copy shards across both cores.
    if (R * L * itemsize >= 2 * 1024 * 1024
            and pl.cdiv(R, br) * pl.cdiv(L, bc) < 2):
        if R >= 2 * sub:
            br = min(br, _round_up((R + 1) // 2, sub))
        elif bc == L and L % 128 == 0 and L >= 256:
            bc = _round_up((L + 1) // 2, 128)

    grid = (pl.cdiv(R, br), pl.cdiv(L, bc))

    out = pl.pallas_call(
        _identity_copy_kernel,
        out_shape=jax.ShapeDtypeStruct((R, L), x.dtype),
        grid=grid,
        in_specs=[pl.BlockSpec((br, bc), lambda i, j: (i, j))],
        out_specs=pl.BlockSpec((br, bc), lambda i, j: (i, j)),
        # Output HBM buffer aliases the input: halves HBM footprint; jit
        # callers that donate x get a zero-copy op boundary.
        input_output_aliases={0: 0},
        # Advisory hint: zero compute, pure bandwidth.
        cost_estimate=pl.CostEstimate(
            flops=0, transcendentals=0,
            bytes_accessed=2 * R * L * itemsize),
        compiler_params=pltpu.CompilerParams(
            dimension_semantics=("parallel", "parallel"),
            vmem_limit_bytes=_VMEM_LIMIT),
    )(x2)
    return out.reshape(N, C, H, W)


def _reference(x):
    # Pure-JAX reference mirroring the PyTorch module (unbiased std, eps=1e-6).
    # Note: assumes H*W > 1 (unbiased std divides by hw-1).
    hw = x.shape[2] * x.shape[3]
    avg = jnp.mean(x, axis=(2, 3), keepdims=True)
    std = jnp.sqrt(jnp.sum((x - avg) ** 2, axis=(2, 3), keepdims=True)
                   / (hw - 1))
    skew = jnp.mean((x - avg) ** 3, axis=(2, 3), keepdims=True) / (std + 1e-6) ** 3
    kurt = jnp.mean((x - avg) ** 4, axis=(2, 3), keepdims=True) / (std + 1e-6) ** 4
    stats = jnp.concatenate([avg, std, skew, kurt], axis=1)          # (N, 4C, 1, 1)
    weights = jax.nn.softmax(stats.reshape(x.shape[0], -1), axis=1)[..., None, None]
    return x * jnp.sum(weights, axis=1, keepdims=True)


if __name__ == "__main__":
    # Primary shape from the spec (lane-folded path, aliased single block).
    x = jax.random.normal(jax.random.PRNGKey(0), (2, 4, 16, 16), jnp.float32)
    out = jax.block_until_ready(statistical_attention(x))
    assert out.shape == x.shape and out.dtype == x.dtype
    assert jnp.allclose(out, _reference(x), atol=1e-5, rtol=1e-5)

    # numel not a multiple of 128 -> (N*C, H*W) fallback, full-extent blocks.
    x2 = jax.random.normal(jax.random.PRNGKey(1), (2, 3, 7, 7), jnp.float32)
    out2 = jax.block_until_ready(statistical_attention(x2))
    assert jnp.allclose(out2, _reference(x2), atol=1e-5, rtol=1e-5)

    # Multi-block grid with a ragged (masked) sublane tail.
    x3 = jax.random.normal(jax.random.PRNGKey(2), (2, 8, 40, 40), jnp.float32)
    out3 = jax.block_until_ready(
        statistical_attention(x3, block_bytes=32 * 1024, max_lane=1024))
    assert jnp.allclose(out3, _reference(x3), atol=1e-5, rtol=1e-5)

    # Masked lane tail: L=324 split into 256-lane blocks.
    x4 = jax.random.normal(jax.random.PRNGKey(3), (2, 4, 18, 18), jnp.float32)
    out4 = jax.block_until_ready(
        statistical_attention(x4, block_bytes=32 * 1024, max_lane=256))
    assert jnp.allclose(out4, _reference(x4), atol=1e-5, rtol=1e-5)

    print("KERNEL_OK")
</pallas_src>

<mosaic_0001>
module attributes {stable_mosaic.version = 11 : i64} {
  func.func @_identity_copy_kernel(%arg0: i32, %arg1: i32, %arg2: memref<1x2048xf32, #tpu.memory_space<vmem>>, %arg3: memref<1x2048xf32, #tpu.memory_space<vmem>>) attributes {dimension_semantics = [#tpu.dimension_semantics<parallel>, #tpu.dimension_semantics<parallel>], iteration_bounds = array<i64: 1, 1>, scalar_prefetch = 0 : i64, scratch_operands = 0 : i64, tpu.core_type = #tpu.core_type<tc>, window_params = [{transform_indices = @transform_0, window_bounds = array<i64: 1, 2048>}, {transform_indices = @transform_1, window_bounds = array<i64: 1, 2048>}]} {
    %c0 = arith.constant 0 : index
    %c0_0 = arith.constant 0 : index
    %0 = vector.load %arg2[%c0, %c0_0] : memref<1x2048xf32, #tpu.memory_space<vmem>>, vector<1x2048xf32>
    %c0_1 = arith.constant 0 : index
    %c0_2 = arith.constant 0 : index
    %1 = vector.load %arg3[%c0_1, %c0_2] : memref<1x2048xf32, #tpu.memory_space<vmem>>, vector<1x2048xf32>
    tpu.vector_store %arg3[%c0_1, %c0_2], %0 {strides = array<i32>} : memref<1x2048xf32, #tpu.memory_space<vmem>>, vector<1x2048xf32>,
    return
  }
  func.func @transform_0(%arg0: i32, %arg1: i32) -> (i32, i32) {
    %c0_i32 = arith.constant 0 : i32
    return %arg0, %arg1 : i32, i32
  }
  func.func @transform_1(%arg0: i32, %arg1: i32) -> (i32, i32) {
    %c0_i32 = arith.constant 0 : i32
    return %arg0, %arg1 : i32, i32
  }
}

</mosaic_0001>

<llo_original>
// kernel: tpu_custom_call.1
$region0: #{tpu_custom_call.1}
  #allocation0 [shape = 'u32[]', space=smem, size = 0x4, offset = 0x4, fixed_abs, tag = 'smem constant byte address 0x4 - core index']
  #allocation1 [shape = 'u32[72,128]{1,0:T(1,128)}', space=vmem, size = 0x9000, scoped, tag = 'internal scratch']
  %s0 = inlined_call_operand.hbm [shape: f32[1,2048], index: 0, kind: input, shape index: {}, may-alias: {0,1}]
  %s1 = inlined_call_operand.hbm [shape: f32[1,2048], index: 1, kind: output, shape index: {}, may-alias: {0,1}]
  %s2 = sld [smem:[#allocation0]]
  $region18: #{tpu_custom_call.1} parent=0
    _
  %s4 = ssub.s32 1, %s2
  %s5 = scalar_select 0, %s4, %s2
  $region1: #{tpu_custom_call.1} parent=0
    #allocation2 [shape = 'u8[8192]{0}', space=vmem, size = 0x2000, scoped, tag = 'input window, operand 0, single buffered']
    #allocation3 [shape = 's32[1]{0}', space=sflag, size = 0x4, scoped, tag = 'scoped memory for tpu_custom_call.1']
    #allocation4 [shape = 's32[1]{0}', space=sflag, size = 0x4, scoped, tag = 'scoped memory for tpu_custom_call.1']
    #allocation5 [shape = 'u8[8192]{0}', space=vmem, size = 0x2000, scoped, tag = 'output window, operand 0, single buffered']
    %6 = vsyncpa [#allocation3], 0
    %7 = vsyncpa [#allocation4], 0
    // Predicated region
    $region2: #{tpu_custom_call.1} parent=1 // pred_check
      _
    $region3: #{tpu_custom_call.1} parent=1 // pred_check_branch
      %9 = sbr.rel (0) target = $region5
    $region4: #{tpu_custom_call.1} parent=1 // pred_region
      %11 = vsyncadd [#allocation3], 0
      %s13 = sshll.u32 %s0, 4
      %s14 = int_to_ptr.hbm [resolvable:$true] %s13
      %s15 = sshll.u32 [#allocation2], 4
      %s16 = int_to_ptr.vmem [resolvable:$true] %s15
      %18 = dma.hbm_to_vmem [thread:$0]  %s14, 256, %s16, [#allocation3]
    $region5: #{tpu_custom_call.1} parent=1 // pred_fallthru
      _
    // Predicated region
    $region6: #{tpu_custom_call.1} parent=1 // pred_check
      _
    $region7: #{tpu_custom_call.1} parent=1 // pred_check_branch
      %20 = sbr.rel (0) target = $region9
    $region8: #{tpu_custom_call.1} parent=1 // pred_region
      %22 = dma.done [#allocation3], 256
    $region9: #{tpu_custom_call.1} parent=1 // pred_fallthru
      _
    %v23 = vld [vmem:[#allocation2] sm:$0xff]
    %v24 = vld [vmem:[#allocation2 + $0x8] sm:$0xff]
    %25 = vst [vmem:[#allocation5] sm:$0xff] %v23
    %26 = vst [vmem:[#allocation5 + $0x8] sm:$0xff] %v24
    // Predicated region
    $region10: #{tpu_custom_call.1} parent=1 // pred_check
      _
    $region11: #{tpu_custom_call.1} parent=1 // pred_check_branch
      %28 = sbr.rel (0) target = $region13
    $region12: #{tpu_custom_call.1} parent=1 // pred_region
      %30 = vsyncadd [#allocation4], 0
      %s32 = sshll.u32 [#allocation5], 4
      %s33 = int_to_ptr.vmem [resolvable:$true] %s32
      %s34 = sshll.u32 %s1, 4
      %s35 = int_to_ptr.hbm [resolvable:$true] %s34
      %37 = dma.vmem_to_hbm [thread:$0]  %s33, 256, %s35, [#allocation4]
    $region13: #{tpu_custom_call.1} parent=1 // pred_fallthru
      _
    // Predicated region
    $region14: #{tpu_custom_call.1} parent=1 // pred_check
      _
    $region15: #{tpu_custom_call.1} parent=1 // pred_check_branch
      %39 = sbr.rel (0) target = $region17
    $region16: #{tpu_custom_call.1} parent=1 // pred_region
      %41 = dma.done [#allocation4], 256
    $region17: #{tpu_custom_call.1} parent=1 // pred_fallthru
      _
    %42 = vsyncpa [#allocation3], 1
    %43 = vsyncpa [#allocation4], 1

</llo_original>
